<compile_context>
chip_gen: v5e
topology: v5e:2x2
jax: 0.10.0
libtpu: 0.0.40
codegen_flags: <defaults>
</compile_context>

<pallas_src>
import jax
import jax.numpy as jnp
from jax.experimental import pallas as pl
from jax.experimental.pallas import tpu as pltpu


def _affine_kernel(x_ref, s_ref, t_ref, z_ref):
    """Single fused element-wise affine: z = x * S + T (f32 accumulate).

    x_ref: (TB, D) input tile (streamed)
    s_ref: (1, D)  folded scale, f32 (VMEM-resident across grid steps)
    t_ref: (1, D)  folded shift, f32 (VMEM-resident across grid steps)
    z_ref: (TB, D) output tile
    """
    x = x_ref[...].astype(jnp.float32)
    z_ref[...] = (x * s_ref[...] + t_ref[...]).astype(z_ref.dtype)


def _sublane_multiple(dtype) -> int:
    """Packed-sublane multiple for the second-minor dim: 8 f32, 16 bf16, 32 i8."""
    itemsize = jnp.dtype(dtype).itemsize
    return max(8, 32 // max(itemsize, 1))


def bijective_composition_forward(x, log_scales, shifts, event_shape,
                                  *, max_tile_rows=1024,
                                  vmem_tile_budget_bytes=24 << 20):
    """Forward pass of BijectiveComposition (L element-wise affine layers).

    x:          (*batch_shape, *event_shape)
    log_scales: (L, D) with D = prod(event_shape)
    shifts:     (L, D)
    returns (z, log_det) with z.shape == x.shape, log_det.shape == batch_shape
    """
    event_ndim = len(event_shape)
    batch_shape = x.shape[: x.ndim - event_ndim]
    d = 1
    for s in event_shape:
        d *= s
    b = 1
    for s in batch_shape:
        b *= s
    b = max(b, 1)

    # ---- Fold the L element-wise affine layers into one affine (exact). ----
    # Done on tiny (L, D) arrays in the wrapper; one exp total for S, suffix
    # log-sums for T (better numerics than a product of per-layer exps).
    log_s = log_scales.astype(jnp.float32)                         # (L, D)
    sh = shifts.astype(jnp.float32)                                 # (L, D)
    total_log_s = jnp.sum(log_s, axis=0)                            # (D,)
    s_total = jnp.exp(total_log_s)                                  # (D,)
    # suffix[l] = sum_{m > l} log_s[m]
    suffix = jnp.cumsum(log_s[::-1], axis=0)[::-1] - log_s          # (L, D)
    t_total = jnp.sum(sh * jnp.exp(suffix), axis=0)                 # (D,)
    s_total = s_total.reshape(1, d)                                 # keep f32
    t_total = t_total.reshape(1, d)                                 # keep f32

    # log|det J| of an element-wise affine composition is batch-independent.
    log_det_scalar = jnp.sum(log_s)
    log_det = jnp.full(batch_shape, log_det_scalar).astype(x.dtype)

    # ---- Tile selection (dtype-aware, VMEM-budgeted, megacore-balanced). ----
    itemsize = jnp.dtype(x.dtype).itemsize
    sub = _sublane_multiple(x.dtype)

    # Rows allowed by the double-buffered in+out VMEM budget (works on v7x too).
    bytes_per_row = d * itemsize
    rows_by_vmem = max(sub, (vmem_tile_budget_bytes // (4 * bytes_per_row)) // sub * sub)
    tb_cap = max(sub, min(max_tile_rows, rows_by_vmem))

    if b <= tb_cap:
        tb = b                      # full-array dim -> always a legal block
    else:
        num_tiles = pl.cdiv(b, tb_cap)
        if num_tiles % 2:           # even tile count -> balanced across 2 TCs (v7x)
            num_tiles += 1
        tb = -(-b // num_tiles)                       # cdiv
        tb = -(-tb // sub) * sub                      # round up to sublane multiple

    grid = (pl.cdiv(b, tb),)        # NO padding: Pallas masks the ragged last block

    # Explicit scoped-VMEM limit from the actual footprint (+ headroom).
    needed = 2 * 2 * tb * d * itemsize + 2 * 2 * d * 4 + (1 << 20)
    vmem_limit = int(min(max(needed * 3 // 2, 8 << 20), 60 << 20))

    x_flat = x.reshape(b, d)

    cost = pl.CostEstimate(
        flops=2 * b * d,
        transcendentals=0,
        bytes_accessed=2 * b * d * itemsize + 2 * d * 4,
    )

    z_flat = pl.pallas_call(
        _affine_kernel,
        out_shape=jax.ShapeDtypeStruct((b, d), x.dtype),
        grid_spec=pltpu.PrefetchScalarGridSpec(
            num_scalar_prefetch=0,
            grid=grid,
            in_specs=[
                pl.BlockSpec((tb, d), lambda i: (i, 0)),    # x tile (streamed)
                pl.BlockSpec((1, d), lambda i: (0, 0)),     # folded scale (resident)
                pl.BlockSpec((1, d), lambda i: (0, 0)),     # folded shift (resident)
            ],
            out_specs=pl.BlockSpec((tb, d), lambda i: (i, 0)),
        ),
        compiler_params=pltpu.CompilerParams(
            dimension_semantics=("parallel",),              # shard batch tiles across TCs
            vmem_limit_bytes=vmem_limit,
        ),
        cost_estimate=cost,
    )(x_flat, s_total, t_total)

    z = z_flat.reshape(x.shape)
    return z, log_det


def _reference_forward(x, log_scales, shifts, event_shape):
    """Pure-JAX reference mirroring the PyTorch BijectiveComposition.forward
    (sequential layer application)."""
    event_ndim = len(event_shape)
    batch_shape = x.shape[: x.ndim - event_ndim]
    d = log_scales.shape[1]
    x_flat = x.reshape((-1, d)).astype(jnp.float32)
    log_det = jnp.zeros((x_flat.shape[0],), jnp.float32)
    for l in range(log_scales.shape[0]):
        x_flat = x_flat * jnp.exp(log_scales[l])[None, :] + shifts[l][None, :]
        log_det = log_det + jnp.sum(log_scales[l])
    return x_flat.reshape(x.shape), log_det.reshape(batch_shape)


if __name__ == "__main__":
    key = jax.random.PRNGKey(0)
    kx, ks, kb, kx2 = jax.random.split(key, 4)

    # Case 1: small shapes consistent with the module: batch=2, event=(4,16,16)
    batch = 2
    event_shape = (4, 16, 16)
    n_dim = 4 * 16 * 16  # 1024
    num_layers = 3

    x = jax.random.normal(kx, (batch,) + event_shape, dtype=jnp.float32)
    log_scales = 0.1 * jax.random.normal(ks, (num_layers, n_dim), dtype=jnp.float32)
    shifts = 0.1 * jax.random.normal(kb, (num_layers, n_dim), dtype=jnp.float32)

    z, log_det = bijective_composition_forward(x, log_scales, shifts, event_shape)
    z = jax.block_until_ready(z)
    log_det = jax.block_until_ready(log_det)

    z_ref, ld_ref = _reference_forward(x, log_scales, shifts, event_shape)
    assert z.shape == x.shape
    assert log_det.shape == (batch,)
    assert jnp.allclose(z, z_ref, atol=1e-4, rtol=1e-4)
    assert jnp.allclose(log_det, ld_ref, atol=1e-4, rtol=1e-5)

    # Case 2: larger batch -> balanced even grid (tb=520, grid=(2,)), no padding.
    batch2 = 1040
    x2 = jax.random.normal(kx2, (batch2,) + event_shape, dtype=jnp.float32)
    z2, ld2 = bijective_composition_forward(x2, log_scales, shifts, event_shape)
    z2 = jax.block_until_ready(z2)
    ld2 = jax.block_until_ready(ld2)

    z2_ref, ld2_ref = _reference_forward(x2, log_scales, shifts, event_shape)
    assert z2.shape == x2.shape
    assert ld2.shape == (batch2,)
    assert jnp.allclose(z2, z2_ref, atol=1e-4, rtol=1e-4)
    assert jnp.allclose(ld2, ld2_ref, atol=1e-4, rtol=1e-5)

    # Case 3: force a ragged last block (grid=(6,), 6*176 > 1040) to exercise the
    # unpadded masked-last-tile path.
    z3, ld3 = bijective_composition_forward(
        x2, log_scales, shifts, event_shape, max_tile_rows=192)
    z3 = jax.block_until_ready(z3)
    ld3 = jax.block_until_ready(ld3)
    assert jnp.allclose(z3, z2_ref, atol=1e-4, rtol=1e-4)
    assert jnp.allclose(ld3, ld2_ref, atol=1e-4, rtol=1e-5)

    print("KERNEL_OK")
</pallas_src>

<mosaic_0001>
module attributes {stable_mosaic.version = 11 : i64} {
  func.func @_affine_kernel(%arg0: i32, %arg1: memref<2x1024xf32, #tpu.memory_space<vmem>>, %arg2: memref<1x1024xf32, #tpu.memory_space<vmem>>, %arg3: memref<1x1024xf32, #tpu.memory_space<vmem>>, %arg4: memref<2x1024xf32, #tpu.memory_space<vmem>>) attributes {dimension_semantics = [#tpu.dimension_semantics<parallel>], iteration_bounds = array<i64: 1>, scalar_prefetch = 0 : i64, scratch_operands = 0 : i64, tpu.core_type = #tpu.core_type<tc>, window_params = [{transform_indices = @transform_0, window_bounds = array<i64: 2, 1024>}, {pipeline_mode = #tpu.pipeline_mode<synchronous>, transform_indices = @transform_1, window_bounds = array<i64: 1, 1024>}, {pipeline_mode = #tpu.pipeline_mode<synchronous>, transform_indices = @transform_2, window_bounds = array<i64: 1, 1024>}, {transform_indices = @transform_3, window_bounds = array<i64: 2, 1024>}]} {
    %c0 = arith.constant 0 : index
    %c0_0 = arith.constant 0 : index
    %0 = vector.load %arg1[%c0, %c0_0] : memref<2x1024xf32, #tpu.memory_space<vmem>>, vector<2x1024xf32>
    %c0_1 = arith.constant 0 : index
    %c0_2 = arith.constant 0 : index
    %1 = vector.load %arg2[%c0_1, %c0_2] : memref<1x1024xf32, #tpu.memory_space<vmem>>, vector<1x1024xf32>
    %2 = vector.broadcast %1 : vector<1x1024xf32> to vector<2x1024xf32>
    %3 = arith.mulf %0, %2 : vector<2x1024xf32>
    %c0_3 = arith.constant 0 : index
    %c0_4 = arith.constant 0 : index
    %4 = vector.load %arg3[%c0_3, %c0_4] : memref<1x1024xf32, #tpu.memory_space<vmem>>, vector<1x1024xf32>
    %5 = vector.broadcast %4 : vector<1x1024xf32> to vector<2x1024xf32>
    %6 = arith.addf %3, %5 : vector<2x1024xf32>
    %c0_5 = arith.constant 0 : index
    %c0_6 = arith.constant 0 : index
    %7 = vector.load %arg4[%c0_5, %c0_6] : memref<2x1024xf32, #tpu.memory_space<vmem>>, vector<2x1024xf32>
    tpu.vector_store %arg4[%c0_5, %c0_6], %6 {strides = array<i32>} : memref<2x1024xf32, #tpu.memory_space<vmem>>, vector<2x1024xf32>,
    return
  }
  func.func @transform_0(%arg0: i32) -> (i32, i32) {
    %c0_i32 = arith.constant 0 : i32
    %c0_i32_0 = arith.constant 0 : i32
    return %arg0, %c0_i32 : i32, i32
  }
  func.func @transform_1(%arg0: i32) -> (i32, i32) {
    %c0_i32 = arith.constant 0 : i32
    %c0_i32_0 = arith.constant 0 : i32
    %c0_i32_1 = arith.constant 0 : i32
    return %c0_i32, %c0_i32_0 : i32, i32
  }
  func.func @transform_2(%arg0: i32) -> (i32, i32) {
    %c0_i32 = arith.constant 0 : i32
    %c0_i32_0 = arith.constant 0 : i32
    %c0_i32_1 = arith.constant 0 : i32
    return %c0_i32, %c0_i32_0 : i32, i32
  }
  func.func @transform_3(%arg0: i32) -> (i32, i32) {
    %c0_i32 = arith.constant 0 : i32
    %c0_i32_0 = arith.constant 0 : i32
    return %arg0, %c0_i32 : i32, i32
  }
}

</mosaic_0001>

<llo_original>
// kernel: tpu_custom_call.1
$region0: #{tpu_custom_call.1}
  #allocation0 [shape = 'u32[]', space=smem, size = 0x4, offset = 0x4, fixed_abs, tag = 'smem constant byte address 0x4 - core index']
  #allocation1 [shape = 'u32[72,128]{1,0:T(1,128)}', space=vmem, size = 0x9000, scoped, tag = 'internal scratch']
  %s0 = inlined_call_operand.hbm [shape: f32[2,1024], index: 0, kind: input, shape index: {}]
  %s1 = inlined_call_operand.hbm [shape: f32[1,1024], index: 1, kind: input, shape index: {}]
  %s2 = inlined_call_operand.hbm [shape: f32[1,1024], index: 2, kind: input, shape index: {}]
  %s3 = inlined_call_operand.hbm [shape: f32[2,1024], index: 3, kind: output, shape index: {}]
  %s4 = sld [smem:[#allocation0]]
  $region34: #{tpu_custom_call.1} parent=0
    _
  %s6 = ssub.s32 1, %s4
  %s7 = scalar_select 0, %s6, %s4
  $region1: #{tpu_custom_call.1} parent=0
    #allocation2 [shape = 'u8[8192]{0}', space=vmem, size = 0x2000, scoped, tag = 'input window, operand 0, single buffered']
    #allocation3 [shape = 's32[1]{0}', space=sflag, size = 0x4, scoped, tag = 'scoped memory for tpu_custom_call.1']
    #allocation4 [shape = 's32[1]{0}', space=sflag, size = 0x4, scoped, tag = 'scoped memory for tpu_custom_call.1']
    #allocation5 [shape = 'u8[4096]{0}', space=vmem, size = 0x1000, scoped, tag = 'input window, operand 1, single buffered']
    #allocation6 [shape = 's32[1]{0}', space=sflag, size = 0x4, scoped, tag = 'scoped memory for tpu_custom_call.1']
    #allocation7 [shape = 'u8[4096]{0}', space=vmem, size = 0x1000, scoped, tag = 'input window, operand 2, single buffered']
    #allocation8 [shape = 'u8[8192]{0}', space=vmem, size = 0x2000, scoped, tag = 'output window, operand 0, single buffered']
    %8 = vsyncpa [#allocation3], 0
    %9 = vsyncpa [#allocation6], 0
    %10 = vsyncpa [#allocation4], 0
    // Predicated region
    $region2: #{tpu_custom_call.1} parent=1 // pred_check
      _
    $region3: #{tpu_custom_call.1} parent=1 // pred_check_branch
      %12 = sbr.rel (0) target = $region5
    $region4: #{tpu_custom_call.1} parent=1 // pred_region
      %14 = vsyncadd [#allocation3], 0
      %s16 = sshll.u32 %s0, 4
      %s17 = int_to_ptr.hbm [resolvable:$true] %s16
      %s18 = sshll.u32 [#allocation2], 4
      %s19 = int_to_ptr.vmem [resolvable:$true] %s18
      %21 = dma.hbm_to_vmem [thread:$0]  %s17, 256, %s19, [#allocation3]
    $region5: #{tpu_custom_call.1} parent=1 // pred_fallthru
      _
    // Predicated region
    $region6: #{tpu_custom_call.1} parent=1 // pred_check
      _
    $region7: #{tpu_custom_call.1} parent=1 // pred_check_branch
      %23 = sbr.rel (0) target = $region9
    $region8: #{tpu_custom_call.1} parent=1 // pred_region
      %25 = vsyncadd [#allocation6], 0
      %s27 = sshll.u32 %s1, 4
      %s28 = int_to_ptr.hbm [resolvable:$true] %s27
      %s29 = sshll.u32 [#allocation5], 4
      %s30 = int_to_ptr.vmem [resolvable:$true] %s29
      %32 = dma.hbm_to_vmem [thread:$0]  %s28, 128, %s30, [#allocation6]
    $region9: #{tpu_custom_call.1} parent=1 // pred_fallthru
      _
    // Predicated region
    $region10: #{tpu_custom_call.1} parent=1 // pred_check
      _
    $region11: #{tpu_custom_call.1} parent=1 // pred_check_branch
      %34 = sbr.rel (0) target = $region13
    $region12: #{tpu_custom_call.1} parent=1 // pred_region
      %36 = vsyncadd [#allocation6], 0
      %s38 = sshll.u32 %s2, 4
      %s39 = int_to_ptr.hbm [resolvable:$true] %s38
      %s40 = sshll.u32 [#allocation7], 4
      %s41 = int_to_ptr.vmem [resolvable:$true] %s40
      %43 = dma.hbm_to_vmem [thread:$0]  %s39, 128, %s41, [#allocation6]
    $region13: #{tpu_custom_call.1} parent=1 // pred_fallthru
      _
    // Predicated region
    $region14: #{tpu_custom_call.1} parent=1 // pred_check
      _
    $region15: #{tpu_custom_call.1} parent=1 // pred_check_branch
      %45 = sbr.rel (0) target = $region17
    $region16: #{tpu_custom_call.1} parent=1 // pred_region
      %47 = dma.done [#allocation3], 256
    $region17: #{tpu_custom_call.1} parent=1 // pred_fallthru
      _
    // Predicated region
    $region18: #{tpu_custom_call.1} parent=1 // pred_check
      _
    $region19: #{tpu_custom_call.1} parent=1 // pred_check_branch
      %49 = sbr.rel (0) target = $region21
    $region20: #{tpu_custom_call.1} parent=1 // pred_region
      %51 = dma.done [#allocation6], 128
    $region21: #{tpu_custom_call.1} parent=1 // pred_fallthru
      _
    // Predicated region
    $region22: #{tpu_custom_call.1} parent=1 // pred_check
      _
    $region23: #{tpu_custom_call.1} parent=1 // pred_check_branch
      %53 = sbr.rel (0) target = $region25
    $region24: #{tpu_custom_call.1} parent=1 // pred_region
      %55 = dma.done [#allocation6], 128
    $region25: #{tpu_custom_call.1} parent=1 // pred_fallthru
      _
    %v56 = vld [vmem:[#allocation2] sm:$0xff]
    %v57 = vld [vmem:[#allocation2 + $0x8] sm:$0xff]
    %v58 = vld [vmem:[#allocation5] sm:$0xff]
    %v60 = vperm.slane %v58, 0
    %v61 = vperm.slane %v58, 1
    %v62 = vperm.slane %v58, 2
    %v63 = vperm.slane %v58, 3
    %v64 = vperm.slane %v58, 4
    %v65 = vperm.slane %v58, 5
    %v66 = vperm.slane %v58, 6
    %v67 = vperm.slane %v58, 7
    %v68 = vrot.slane %v61, 6
    %v69 = vrot.slane %v62, 4
    %v70 = vrot.slane %v63, 2
    %v71 = vrot.slane %v65, 6
    %v72 = vrot.slane %v66, 4
    %v73 = vrot.slane %v67, 2
    %vm74 = vcmask 1041408
    %v75 = vsel %vm74, %v60, %v68
    %vm76 = vcmask 1045508
    %v77 = vsel %vm76, %v69, %v70
    %vm78 = vcmask 1043456
    %v79 = vsel %vm78, %v75, %v77
    %v80 = vsel %vm74, %v64, %v71
    %v81 = vsel %vm76, %v72, %v73
    %v82 = vsel %vm78, %v80, %v81
    %v85 = vmul.f32 %v56, %v79
    %v86 = vmul.f32 %v57, %v82
    %v87 = vld [vmem:[#allocation7] sm:$0xff]
    %v89 = vperm.slane %v87, 0
    %v90 = vperm.slane %v87, 1
    %v91 = vperm.slane %v87, 2
    %v92 = vperm.slane %v87, 3
    %v93 = vperm.slane %v87, 4
    %v94 = vperm.slane %v87, 5
    %v95 = vperm.slane %v87, 6
    %v96 = vperm.slane %v87, 7
    %v97 = vrot.slane %v90, 6
    %v98 = vrot.slane %v91, 4
    %v99 = vrot.slane %v92, 2
    %v100 = vrot.slane %v94, 6
    %v101 = vrot.slane %v95, 4
    %v102 = vrot.slane %v96, 2
    %v103 = vsel %vm74, %v89, %v97
    %v104 = vsel %vm76, %v98, %v99
    %v105 = vsel %vm78, %v103, %v104
    %v106 = vsel %vm74, %v93, %v100
    %v107 = vsel %vm76, %v101, %v102
    %v108 = vsel %vm78, %v106, %v107
    %v111 = vadd.f32 %v85, %v105
    %v112 = vadd.f32 %v86, %v108
    %113 = vst [vmem:[#allocation8] sm:$0xff] %v111
    %114 = vst [vmem:[#allocation8 + $0x8] sm:$0xff] %v112
    // Predicated region
    $region26: #{tpu_custom_call.1} parent=1 // pred_check
      _
    $region27: #{tpu_custom_call.1} parent=1 // pred_check_branch
      %116 = sbr.rel (0) target = $region29
    $region28: #{tpu_custom_call.1} parent=1 // pred_region
      %118 = vsyncadd [#allocation4], 0
      %s120 = sshll.u32 [#allocation8], 4
      %s121 = int_to_ptr.vmem [resolvable:$true] %s120
      %s122 = sshll.u32 %s3, 4
      %s123 = int_to_ptr.hbm [resolvable:$true] %s122
      %125 = dma.vmem_to_hbm [thread:$0]  %s121, 256, %s123, [#allocation4]
    $region29: #{tpu_custom_call.1} parent=1 // pred_fallthru
      _
    // Predicated region
    $region30: #{tpu_custom_call.1} parent=1 // pred_check
      _
    $region31: #{tpu_custom_call.1} parent=1 // pred_check_branch
      %127 = sbr.rel (0) target = $region33
    $region32: #{tpu_custom_call.1} parent=1 // pred_region
      %129 = dma.done [#allocation4], 256
    $region33: #{tpu_custom_call.1} parent=1 // pred_fallthru
      _
    %130 = vsyncpa [#allocation3], 1
    %131 = vsyncpa [#allocation6], 1
    %132 = vsyncpa [#allocation4], 1

</llo_original>
